<compile_context>
chip_gen: v7x
topology: tpu7x:2x2x1
jax: 0.10.0
libtpu: 0.0.40
codegen_flags: <defaults>
</compile_context>

<pallas_src>
import functools

import jax
import jax.numpy as jnp
from jax import lax
from jax.experimental import pallas as pl
from jax.experimental.pallas import tpu as pltpu


def _round_up(x, m):
    return (x + m - 1) // m * m


def _padded_bytes(shape, dtype):
    """Tile-padded VMEM footprint of a 2-D buffer (lanes->128, sublanes->8*(4/itemsize))."""
    r, c = shape
    item = jnp.dtype(dtype).itemsize
    sub = 8 * (4 // item)  # 8 for f32, 16 for bf16
    return _round_up(r, sub) * _round_up(c, 128) * item


def lstm_fc_kernel(x_ref, wih_ref, whh_ref, b_ref, wfc_ref, bfc_ref,
                   out_ref, xproj_ref, *, seq, b_pad, h_g):
    # Hoisted input projection: all timesteps in one bf16 MXU matmul (f32 accumulate),
    # bias folded in.  Off the serial critical path of the recurrence.
    xproj_ref[...] = (
        jnp.dot(x_ref[...], wih_ref[...], preferred_element_type=jnp.float32)
        + b_ref[...]
    )  # (seq * b_pad, 4 * h_g) f32

    h0 = jnp.zeros((b_pad, h_g), jnp.float32)
    c0 = jnp.zeros((b_pad, h_g), jnp.float32)

    def step(t, carry):
        h, c = carry
        base = pl.multiple_of(t * b_pad, b_pad)
        # Read whh straight from its VMEM ref (do NOT hold the full weight as a live
        # value across the unrolled loop -> avoids vreg spills).
        # TODO(synk): stage this RHS in the MXU once (matmul_push_rhs) and only push
        # LHS per step; explicit MXU driving is kept out for lowering robustness.
        gates = (
            xproj_ref[pl.ds(base, b_pad), :]
            + jnp.dot(h.astype(jnp.bfloat16), whh_ref[...],
                      preferred_element_type=jnp.float32)
        )  # (b_pad, 4*h_g), torch gate order [i, f, g, o]
        i_g = jax.nn.sigmoid(gates[:, 0 * h_g:1 * h_g])
        f_g = jax.nn.sigmoid(gates[:, 1 * h_g:2 * h_g])
        g_g = jnp.tanh(gates[:, 2 * h_g:3 * h_g])
        o_g = jax.nn.sigmoid(gates[:, 3 * h_g:4 * h_g])
        c_new = f_g * c + i_g * g_g
        h_new = o_g * jnp.tanh(c_new)
        return (h_new, c_new)

    # Short static trip count -> full unroll for scheduling visibility; partial unroll
    # for long sequences to avoid code-size / live-range blowup.
    h_last, _ = lax.fori_loop(0, seq, step, (h0, c0),
                              unroll=True if seq <= 16 else 8)

    # FC head on the last timestep's hidden state (lane-dense, unmasked store).
    out_ref[...] = (
        jnp.dot(h_last.astype(jnp.bfloat16), wfc_ref[...],
                preferred_element_type=jnp.float32)
        + bfc_ref[...]
    )


def lstm_forward(x, w_ih, w_hh, b_ih, b_hh, w_fc, b_fc):
    """x: (batch, seq, input_size) float32 -> (batch, output_size) float32."""
    B, S, I = x.shape
    H = w_ih.shape[0] // 4
    O = w_fc.shape[0]

    B_pad = _round_up(B, 8)      # f32 sublane tile
    # Per-gate column stride.  If the 4 gates already tile the 128-lane vreg, keep them
    # packed (no zero columns -> narrowest possible recurrent matmul / EUP work, the big
    # win for small H, esp. v5e).  Otherwise pad each gate to a 128-lane block.
    Hg = H if (4 * H) % 128 == 0 else _round_up(H, 128)
    O_pad = _round_up(O, 128)    # unmasked final store

    # Glue: time-major, pad batch with zero rows, flatten (S, B_pad) -> rows so the input
    # projection is one big MXU matmul in the kernel.  (For production S*B*I, fold this
    # transpose into the kernel's streaming DMA via a BlockSpec index_map instead.)
    x_tm = jnp.transpose(x, (1, 0, 2)).astype(jnp.float32)            # (S, B, I)
    x_tm = jnp.pad(x_tm, ((0, 0), (0, B_pad - B), (0, 0)))            # (S, B_pad, I)
    x_flat = x_tm.reshape(S * B_pad, I).astype(jnp.bfloat16)          # MXU operand

    # Per-gate zero padding (no-op when Hg == H) keeps padded gate columns/bias exactly
    # zero, so padded hidden/cell units stay identically 0 through the recurrence.
    wih_t = jnp.transpose(w_ih).astype(jnp.float32).reshape(I, 4, H)
    wih_p = (jnp.pad(wih_t, ((0, 0), (0, 0), (0, Hg - H)))
             .reshape(I, 4 * Hg).astype(jnp.bfloat16))

    whh_t = jnp.transpose(w_hh).astype(jnp.float32).reshape(H, 4, H)
    whh_p = (jnp.pad(whh_t, ((0, Hg - H), (0, 0), (0, Hg - H)))
             .reshape(Hg, 4 * Hg).astype(jnp.bfloat16))

    b = (b_ih + b_hh).astype(jnp.float32).reshape(1, 4, H)
    b_p = jnp.pad(b, ((0, 0), (0, 0), (0, Hg - H))).reshape(1, 4 * Hg)  # f32 (post-MXU)

    wfc_p = (jnp.pad(jnp.transpose(w_fc).astype(jnp.float32),
                     ((0, Hg - H), (0, O_pad - O)))
             .astype(jnp.bfloat16))                                     # (Hg, O_pad)
    bfc_p = jnp.pad(b_fc.astype(jnp.float32).reshape(1, O), ((0, 0), (0, O_pad - O)))

    # Right-sized VMEM cap: real tile-padded footprint (+headroom), not a blanket 64 MiB.
    buf_bytes = (
        _padded_bytes(x_flat.shape, x_flat.dtype)
        + _padded_bytes(wih_p.shape, wih_p.dtype)
        + _padded_bytes(whh_p.shape, whh_p.dtype)
        + _padded_bytes(b_p.shape, b_p.dtype)
        + _padded_bytes(wfc_p.shape, wfc_p.dtype)
        + _padded_bytes(bfc_p.shape, bfc_p.dtype)
        + _padded_bytes((B_pad, O_pad), jnp.float32)
        + _padded_bytes((S * B_pad, 4 * Hg), jnp.float32)   # xproj scratch
    )
    vmem_limit = min(max(2 * buf_bytes + (2 << 20), 4 << 20), 32 << 20)

    vmem = pl.BlockSpec(memory_space=pltpu.MemorySpace.VMEM)
    out_p = pl.pallas_call(
        functools.partial(lstm_fc_kernel, seq=S, b_pad=B_pad, h_g=Hg),
        out_shape=jax.ShapeDtypeStruct((B_pad, O_pad), jnp.float32),
        in_specs=[vmem] * 6,
        out_specs=vmem,
        scratch_shapes=[pltpu.VMEM((S * B_pad, 4 * Hg), jnp.float32)],
        compiler_params=pltpu.CompilerParams(vmem_limit_bytes=vmem_limit),
    )(x_flat, wih_p, whh_p, b_p, wfc_p, bfc_p)

    return out_p[:B, :O]


def lstm_reference(x, w_ih, w_hh, b_ih, b_hh, w_fc, b_fc):
    """Pure-JAX f32 reference matching torch.nn.LSTM(batch_first=True) + Linear."""
    B, S, I = x.shape
    H = w_hh.shape[1]
    h = jnp.zeros((B, H), jnp.float32)
    c = jnp.zeros((B, H), jnp.float32)
    for t in range(S):
        gates = x[:, t, :] @ w_ih.T + h @ w_hh.T + b_ih + b_hh
        i_g = jax.nn.sigmoid(gates[:, 0 * H:1 * H])
        f_g = jax.nn.sigmoid(gates[:, 1 * H:2 * H])
        g_g = jnp.tanh(gates[:, 2 * H:3 * H])
        o_g = jax.nn.sigmoid(gates[:, 3 * H:4 * H])
        c = f_g * c + i_g * g_g
        h = o_g * jnp.tanh(c)
    return h @ w_fc.T + b_fc


if __name__ == "__main__":
    # Small shapes consistent with the module's forward.
    batch, seq, input_size, hidden_size, output_size = 2, 8, 16, 32, 8

    key = jax.random.PRNGKey(0)
    ks = jax.random.split(key, 7)
    bound = 1.0 / jnp.sqrt(hidden_size)

    x = jax.random.normal(ks[0], (batch, seq, input_size), jnp.float32)
    w_ih = jax.random.uniform(ks[1], (4 * hidden_size, input_size), jnp.float32, -bound, bound)
    w_hh = jax.random.uniform(ks[2], (4 * hidden_size, hidden_size), jnp.float32, -bound, bound)
    b_ih = jax.random.uniform(ks[3], (4 * hidden_size,), jnp.float32, -bound, bound)
    b_hh = jax.random.uniform(ks[4], (4 * hidden_size,), jnp.float32, -bound, bound)
    w_fc = jax.random.uniform(ks[5], (output_size, hidden_size), jnp.float32, -bound, bound)
    b_fc = jax.random.uniform(ks[6], (output_size,), jnp.float32, -bound, bound)

    out = lstm_forward(x, w_ih, w_hh, b_ih, b_hh, w_fc, b_fc)
    out = jax.block_until_ready(out)

    ref = lstm_reference(x, w_ih, w_hh, b_ih, b_hh, w_fc, b_fc)
    assert out.shape == (batch, output_size)
    # bf16 MXU operands with f32 accumulation -> loosened tolerance vs the f32 reference.
    assert jnp.allclose(out, ref, atol=3e-2, rtol=3e-2), "mismatch vs reference"

    print("KERNEL_OK")
</pallas_src>

<mosaic_0001>
module attributes {stable_mosaic.version = 11 : i64} {
  func.func @lstm_fc_kernel(%arg0: memref<64x16xbf16, #tpu.memory_space<vmem>>, %arg1: memref<16x128xbf16, #tpu.memory_space<vmem>>, %arg2: memref<32x128xbf16, #tpu.memory_space<vmem>>, %arg3: memref<1x128xf32, #tpu.memory_space<vmem>>, %arg4: memref<32x128xbf16, #tpu.memory_space<vmem>>, %arg5: memref<1x128xf32, #tpu.memory_space<vmem>>, %arg6: memref<8x128xf32, #tpu.memory_space<vmem>>, %arg7: memref<64x128xf32, #tpu.memory_space<vmem>>) attributes {dimension_semantics = [], scalar_prefetch = 0 : i64, scratch_operands = 1 : i64, tpu.core_type = #tpu.core_type<tc>} {
    %c0 = arith.constant 0 : index
    %c0_0 = arith.constant 0 : index
    %0 = vector.load %arg0[%c0, %c0_0] : memref<64x16xbf16, #tpu.memory_space<vmem>>, vector<64x16xbf16>
    %c0_1 = arith.constant 0 : index
    %c0_2 = arith.constant 0 : index
    %1 = vector.load %arg1[%c0_1, %c0_2] : memref<16x128xbf16, #tpu.memory_space<vmem>>, vector<16x128xbf16>
    %cst = arith.constant dense<0.000000e+00> : vector<64x128xf32>
    %2 = tpu.matmul %0, %1, %cst {dimension_numbers = #tpu.dot_dimension_numbers<[1], [0], [0], [1], [0, 0, 1, 1], [], []>} : vector<64x16xbf16>, vector<16x128xbf16>, vector<64x128xf32> -> vector<64x128xf32>
    %c0_3 = arith.constant 0 : index
    %c0_4 = arith.constant 0 : index
    %3 = vector.load %arg3[%c0_3, %c0_4] : memref<1x128xf32, #tpu.memory_space<vmem>>, vector<1x128xf32>
    %4 = vector.broadcast %3 : vector<1x128xf32> to vector<64x128xf32>
    %5 = arith.addf %2, %4 : vector<64x128xf32>
    %c0_5 = arith.constant 0 : index
    %c0_6 = arith.constant 0 : index
    %6 = vector.load %arg7[%c0_5, %c0_6] : memref<64x128xf32, #tpu.memory_space<vmem>>, vector<64x128xf32>
    tpu.vector_store %arg7[%c0_5, %c0_6], %5 {strides = array<i32>} : memref<64x128xf32, #tpu.memory_space<vmem>>, vector<64x128xf32>,
    %cst_7 = arith.constant 0.000000e+00 : f32
    %7 = vector.broadcast %cst_7 : f32 to vector<8x32xf32>
    %cst_8 = arith.constant 0.000000e+00 : f32
    %8 = vector.broadcast %cst_8 : f32 to vector<8x32xf32>
    %c0_i32 = arith.constant 0 : i32
    %c8_i32 = arith.constant 8 : i32
    %9 = arith.muli %c0_i32, %c8_i32 : i32
    %10 = tpu.assume_multiple %9, 8 : i32
    %11 = arith.index_cast %10 : i32 to index
    %c0_9 = arith.constant 0 : index
    %12 = vector.load %arg7[%11, %c0_9] : memref<64x128xf32, #tpu.memory_space<vmem>>, vector<8x128xf32>
    %13 = arith.truncf %7 : vector<8x32xf32> to vector<8x32xbf16>
    %c0_10 = arith.constant 0 : index
    %c0_11 = arith.constant 0 : index
    %14 = vector.load %arg2[%c0_10, %c0_11] : memref<32x128xbf16, #tpu.memory_space<vmem>>, vector<32x128xbf16>
    %cst_12 = arith.constant dense<0.000000e+00> : vector<8x128xf32>
    %15 = tpu.matmul %13, %14, %cst_12 {dimension_numbers = #tpu.dot_dimension_numbers<[1], [0], [0], [1], [0, 0, 1, 1], [], []>} : vector<8x32xbf16>, vector<32x128xbf16>, vector<8x128xf32> -> vector<8x128xf32>
    %16 = arith.addf %12, %15 : vector<8x128xf32>
    %17 = vector.extract_strided_slice %16 {offsets = [0, 0], sizes = [8, 32], strides = [1, 1]} : vector<8x128xf32> to vector<8x32xf32>
    %18 = arith.negf %17 : vector<8x32xf32>
    %19 = math.exp %18 : vector<8x32xf32>
    %cst_13 = arith.constant 1.000000e+00 : f32
    %20 = vector.broadcast %cst_13 : f32 to vector<8x32xf32>
    %21 = arith.addf %20, %19 : vector<8x32xf32>
    %22 = arith.divf %20, %21 : vector<8x32xf32>
    %23 = vector.extract_strided_slice %16 {offsets = [0, 32], sizes = [8, 32], strides = [1, 1]} : vector<8x128xf32> to vector<8x32xf32>
    %24 = arith.negf %23 : vector<8x32xf32>
    %25 = math.exp %24 : vector<8x32xf32>
    %cst_14 = arith.constant 1.000000e+00 : f32
    %26 = vector.broadcast %cst_14 : f32 to vector<8x32xf32>
    %27 = arith.addf %26, %25 : vector<8x32xf32>
    %28 = arith.divf %26, %27 : vector<8x32xf32>
    %29 = vector.extract_strided_slice %16 {offsets = [0, 64], sizes = [8, 32], strides = [1, 1]} : vector<8x128xf32> to vector<8x32xf32>
    %30 = math.tanh %29 : vector<8x32xf32>
    %31 = vector.extract_strided_slice %16 {offsets = [0, 96], sizes = [8, 32], strides = [1, 1]} : vector<8x128xf32> to vector<8x32xf32>
    %32 = arith.negf %31 : vector<8x32xf32>
    %33 = math.exp %32 : vector<8x32xf32>
    %cst_15 = arith.constant 1.000000e+00 : f32
    %34 = vector.broadcast %cst_15 : f32 to vector<8x32xf32>
    %35 = arith.addf %34, %33 : vector<8x32xf32>
    %36 = arith.divf %34, %35 : vector<8x32xf32>
    %37 = arith.mulf %28, %8 : vector<8x32xf32>
    %38 = arith.mulf %22, %30 : vector<8x32xf32>
    %39 = arith.addf %37, %38 : vector<8x32xf32>
    %40 = math.tanh %39 : vector<8x32xf32>
    %41 = arith.mulf %36, %40 : vector<8x32xf32>
    %c1_i32 = arith.constant 1 : i32
    %c8_i32_16 = arith.constant 8 : i32
    %42 = arith.muli %c1_i32, %c8_i32_16 : i32
    %43 = tpu.assume_multiple %42, 8 : i32
    %44 = arith.index_cast %43 : i32 to index
    %c0_17 = arith.constant 0 : index
    %45 = vector.load %arg7[%44, %c0_17] : memref<64x128xf32, #tpu.memory_space<vmem>>, vector<8x128xf32>
    %46 = arith.truncf %41 : vector<8x32xf32> to vector<8x32xbf16>
    %c0_18 = arith.constant 0 : index
    %c0_19 = arith.constant 0 : index
    %47 = vector.load %arg2[%c0_18, %c0_19] : memref<32x128xbf16, #tpu.memory_space<vmem>>, vector<32x128xbf16>
    %cst_20 = arith.constant dense<0.000000e+00> : vector<8x128xf32>
    %48 = tpu.matmul %46, %47, %cst_20 {dimension_numbers = #tpu.dot_dimension_numbers<[1], [0], [0], [1], [0, 0, 1, 1], [], []>} : vector<8x32xbf16>, vector<32x128xbf16>, vector<8x128xf32> -> vector<8x128xf32>
    %49 = arith.addf %45, %48 : vector<8x128xf32>
    %50 = vector.extract_strided_slice %49 {offsets = [0, 0], sizes = [8, 32], strides = [1, 1]} : vector<8x128xf32> to vector<8x32xf32>
    %51 = arith.negf %50 : vector<8x32xf32>
    %52 = math.exp %51 : vector<8x32xf32>
    %cst_21 = arith.constant 1.000000e+00 : f32
    %53 = vector.broadcast %cst_21 : f32 to vector<8x32xf32>
    %54 = arith.addf %53, %52 : vector<8x32xf32>
    %55 = arith.divf %53, %54 : vector<8x32xf32>
    %56 = vector.extract_strided_slice %49 {offsets = [0, 32], sizes = [8, 32], strides = [1, 1]} : vector<8x128xf32> to vector<8x32xf32>
    %57 = arith.negf %56 : vector<8x32xf32>
    %58 = math.exp %57 : vector<8x32xf32>
    %cst_22 = arith.constant 1.000000e+00 : f32
    %59 = vector.broadcast %cst_22 : f32 to vector<8x32xf32>
    %60 = arith.addf %59, %58 : vector<8x32xf32>
    %61 = arith.divf %59, %60 : vector<8x32xf32>
    %62 = vector.extract_strided_slice %49 {offsets = [0, 64], sizes = [8, 32], strides = [1, 1]} : vector<8x128xf32> to vector<8x32xf32>
    %63 = math.tanh %62 : vector<8x32xf32>
    %64 = vector.extract_strided_slice %49 {offsets = [0, 96], sizes = [8, 32], strides = [1, 1]} : vector<8x128xf32> to vector<8x32xf32>
    %65 = arith.negf %64 : vector<8x32xf32>
    %66 = math.exp %65 : vector<8x32xf32>
    %cst_23 = arith.constant 1.000000e+00 : f32
    %67 = vector.broadcast %cst_23 : f32 to vector<8x32xf32>
    %68 = arith.addf %67, %66 : vector<8x32xf32>
    %69 = arith.divf %67, %68 : vector<8x32xf32>
    %70 = arith.mulf %61, %39 : vector<8x32xf32>
    %71 = arith.mulf %55, %63 : vector<8x32xf32>
    %72 = arith.addf %70, %71 : vector<8x32xf32>
    %73 = math.tanh %72 : vector<8x32xf32>
    %74 = arith.mulf %69, %73 : vector<8x32xf32>
    %c2_i32 = arith.constant 2 : i32
    %c8_i32_24 = arith.constant 8 : i32
    %75 = arith.muli %c2_i32, %c8_i32_24 : i32
    %76 = tpu.assume_multiple %75, 8 : i32
    %77 = arith.index_cast %76 : i32 to index
    %c0_25 = arith.constant 0 : index
    %78 = vector.load %arg7[%77, %c0_25] : memref<64x128xf32, #tpu.memory_space<vmem>>, vector<8x128xf32>
    %79 = arith.truncf %74 : vector<8x32xf32> to vector<8x32xbf16>
    %c0_26 = arith.constant 0 : index
    %c0_27 = arith.constant 0 : index
    %80 = vector.load %arg2[%c0_26, %c0_27] : memref<32x128xbf16, #tpu.memory_space<vmem>>, vector<32x128xbf16>
    %cst_28 = arith.constant dense<0.000000e+00> : vector<8x128xf32>
    %81 = tpu.matmul %79, %80, %cst_28 {dimension_numbers = #tpu.dot_dimension_numbers<[1], [0], [0], [1], [0, 0, 1, 1], [], []>} : vector<8x32xbf16>, vector<32x128xbf16>, vector<8x128xf32> -> vector<8x128xf32>
    %82 = arith.addf %78, %81 : vector<8x128xf32>
    %83 = vector.extract_strided_slice %82 {offsets = [0, 0], sizes = [8, 32], strides = [1, 1]} : vector<8x128xf32> to vector<8x32xf32>
    %84 = arith.negf %83 : vector<8x32xf32>
    %85 = math.exp %84 : vector<8x32xf32>
    %cst_29 = arith.constant 1.000000e+00 : f32
    %86 = vector.broadcast %cst_29 : f32 to vector<8x32xf32>
    %87 = arith.addf %86, %85 : vector<8x32xf32>
    %88 = arith.divf %86, %87 : vector<8x32xf32>
    %89 = vector.extract_strided_slice %82 {offsets = [0, 32], sizes = [8, 32], strides = [1, 1]} : vector<8x128xf32> to vector<8x32xf32>
    %90 = arith.negf %89 : vector<8x32xf32>
    %91 = math.exp %90 : vector<8x32xf32>
    %cst_30 = arith.constant 1.000000e+00 : f32
    %92 = vector.broadcast %cst_30 : f32 to vector<8x32xf32>
    %93 = arith.addf %92, %91 : vector<8x32xf32>
    %94 = arith.divf %92, %93 : vector<8x32xf32>
    %95 = vector.extract_strided_slice %82 {offsets = [0, 64], sizes = [8, 32], strides = [1, 1]} : vector<8x128xf32> to vector<8x32xf32>
    %96 = math.tanh %95 : vector<8x32xf32>
    %97 = vector.extract_strided_slice %82 {offsets = [0, 96], sizes = [8, 32], strides = [1, 1]} : vector<8x128xf32> to vector<8x32xf32>
    %98 = arith.negf %97 : vector<8x32xf32>
    %99 = math.exp %98 : vector<8x32xf32>
    %cst_31 = arith.constant 1.000000e+00 : f32
    %100 = vector.broadcast %cst_31 : f32 to vector<8x32xf32>
    %101 = arith.addf %100, %99 : vector<8x32xf32>
    %102 = arith.divf %100, %101 : vector<8x32xf32>
    %103 = arith.mulf %94, %72 : vector<8x32xf32>
    %104 = arith.mulf %88, %96 : vector<8x32xf32>
    %105 = arith.addf %103, %104 : vector<8x32xf32>
    %106 = math.tanh %105 : vector<8x32xf32>
    %107 = arith.mulf %102, %106 : vector<8x32xf32>
    %c3_i32 = arith.constant 3 : i32
    %c8_i32_32 = arith.constant 8 : i32
    %108 = arith.muli %c3_i32, %c8_i32_32 : i32
    %109 = tpu.assume_multiple %108, 8 : i32
    %110 = arith.index_cast %109 : i32 to index
    %c0_33 = arith.constant 0 : index
    %111 = vector.load %arg7[%110, %c0_33] : memref<64x128xf32, #tpu.memory_space<vmem>>, vector<8x128xf32>
    %112 = arith.truncf %107 : vector<8x32xf32> to vector<8x32xbf16>
    %c0_34 = arith.constant 0 : index
    %c0_35 = arith.constant 0 : index
    %113 = vector.load %arg2[%c0_34, %c0_35] : memref<32x128xbf16, #tpu.memory_space<vmem>>, vector<32x128xbf16>
    %cst_36 = arith.constant dense<0.000000e+00> : vector<8x128xf32>
    %114 = tpu.matmul %112, %113, %cst_36 {dimension_numbers = #tpu.dot_dimension_numbers<[1], [0], [0], [1], [0, 0, 1, 1], [], []>} : vector<8x32xbf16>, vector<32x128xbf16>, vector<8x128xf32> -> vector<8x128xf32>
    %115 = arith.addf %111, %114 : vector<8x128xf32>
    %116 = vector.extract_strided_slice %115 {offsets = [0, 0], sizes = [8, 32], strides = [1, 1]} : vector<8x128xf32> to vector<8x32xf32>
    %117 = arith.negf %116 : vector<8x32xf32>
    %118 = math.exp %117 : vector<8x32xf32>
    %cst_37 = arith.constant 1.000000e+00 : f32
    %119 = vector.broadcast %cst_37 : f32 to vector<8x32xf32>
    %120 = arith.addf %119, %118 : vector<8x32xf32>
    %121 = arith.divf %119, %120 : vector<8x32xf32>
    %122 = vector.extract_strided_slice %115 {offsets = [0, 32], sizes = [8, 32], strides = [1, 1]} : vector<8x128xf32> to vector<8x32xf32>
    %123 = arith.negf %122 : vector<8x32xf32>
    %124 = math.exp %123 : vector<8x32xf32>
    %cst_38 = arith.constant 1.000000e+00 : f32
    %125 = vector.broadcast %cst_38 : f32 to vector<8x32xf32>
    %126 = arith.addf %125, %124 : vector<8x32xf32>
    %127 = arith.divf %125, %126 : vector<8x32xf32>
    %128 = vector.extract_strided_slice %115 {offsets = [0, 64], sizes = [8, 32], strides = [1, 1]} : vector<8x128xf32> to vector<8x32xf32>
    %129 = math.tanh %128 : vector<8x32xf32>
    %130 = vector.extract_strided_slice %115 {offsets = [0, 96], sizes = [8, 32], strides = [1, 1]} : vector<8x128xf32> to vector<8x32xf32>
    %131 = arith.negf %130 : vector<8x32xf32>
    %132 = math.exp %131 : vector<8x32xf32>
    %cst_39 = arith.constant 1.000000e+00 : f32
    %133 = vector.broadcast %cst_39 : f32 to vector<8x32xf32>
    %134 = arith.addf %133, %132 : vector<8x32xf32>
    %135 = arith.divf %133, %134 : vector<8x32xf32>
    %136 = arith.mulf %127, %105 : vector<8x32xf32>
    %137 = arith.mulf %121, %129 : vector<8x32xf32>
    %138 = arith.addf %136, %137 : vector<8x32xf32>
    %139 = math.tanh %138 : vector<8x32xf32>
    %140 = arith.mulf %135, %139 : vector<8x32xf32>
    %c4_i32 = arith.constant 4 : i32
    %c8_i32_40 = arith.constant 8 : i32
    %141 = arith.muli %c4_i32, %c8_i32_40 : i32
    %142 = tpu.assume_multiple %141, 8 : i32
    %143 = arith.index_cast %142 : i32 to index
    %c0_41 = arith.constant 0 : index
    %144 = vector.load %arg7[%143, %c0_41] : memref<64x128xf32, #tpu.memory_space<vmem>>, vector<8x128xf32>
    %145 = arith.truncf %140 : vector<8x32xf32> to vector<8x32xbf16>
    %c0_42 = arith.constant 0 : index
    %c0_43 = arith.constant 0 : index
    %146 = vector.load %arg2[%c0_42, %c0_43] : memref<32x128xbf16, #tpu.memory_space<vmem>>, vector<32x128xbf16>
    %cst_44 = arith.constant dense<0.000000e+00> : vector<8x128xf32>
    %147 = tpu.matmul %145, %146, %cst_44 {dimension_numbers = #tpu.dot_dimension_numbers<[1], [0], [0], [1], [0, 0, 1, 1], [], []>} : vector<8x32xbf16>, vector<32x128xbf16>, vector<8x128xf32> -> vector<8x128xf32>
    %148 = arith.addf %144, %147 : vector<8x128xf32>
    %149 = vector.extract_strided_slice %148 {offsets = [0, 0], sizes = [8, 32], strides = [1, 1]} : vector<8x128xf32> to vector<8x32xf32>
    %150 = arith.negf %149 : vector<8x32xf32>
    %151 = math.exp %150 : vector<8x32xf32>
    %cst_45 = arith.constant 1.000000e+00 : f32
    %152 = vector.broadcast %cst_45 : f32 to vector<8x32xf32>
    %153 = arith.addf %152, %151 : vector<8x32xf32>
    %154 = arith.divf %152, %153 : vector<8x32xf32>
    %155 = vector.extract_strided_slice %148 {offsets = [0, 32], sizes = [8, 32], strides = [1, 1]} : vector<8x128xf32> to vector<8x32xf32>
    %156 = arith.negf %155 : vector<8x32xf32>
    %157 = math.exp %156 : vector<8x32xf32>
    %cst_46 = arith.constant 1.000000e+00 : f32
    %158 = vector.broadcast %cst_46 : f32 to vector<8x32xf32>
    %159 = arith.addf %158, %157 : vector<8x32xf32>
    %160 = arith.divf %158, %159 : vector<8x32xf32>
    %161 = vector.extract_strided_slice %148 {offsets = [0, 64], sizes = [8, 32], strides = [1, 1]} : vector<8x128xf32> to vector<8x32xf32>
    %162 = math.tanh %161 : vector<8x32xf32>
    %163 = vector.extract_strided_slice %148 {offsets = [0, 96], sizes = [8, 32], strides = [1, 1]} : vector<8x128xf32> to vector<8x32xf32>
    %164 = arith.negf %163 : vector<8x32xf32>
    %165 = math.exp %164 : vector<8x32xf32>
    %cst_47 = arith.constant 1.000000e+00 : f32
    %166 = vector.broadcast %cst_47 : f32 to vector<8x32xf32>
    %167 = arith.addf %166, %165 : vector<8x32xf32>
    %168 = arith.divf %166, %167 : vector<8x32xf32>
    %169 = arith.mulf %160, %138 : vector<8x32xf32>
    %170 = arith.mulf %154, %162 : vector<8x32xf32>
    %171 = arith.addf %169, %170 : vector<8x32xf32>
    %172 = math.tanh %171 : vector<8x32xf32>
    %173 = arith.mulf %168, %172 : vector<8x32xf32>
    %c5_i32 = arith.constant 5 : i32
    %c8_i32_48 = arith.constant 8 : i32
    %174 = arith.muli %c5_i32, %c8_i32_48 : i32
    %175 = tpu.assume_multiple %174, 8 : i32
    %176 = arith.index_cast %175 : i32 to index
    %c0_49 = arith.constant 0 : index
    %177 = vector.load %arg7[%176, %c0_49] : memref<64x128xf32, #tpu.memory_space<vmem>>, vector<8x128xf32>
    %178 = arith.truncf %173 : vector<8x32xf32> to vector<8x32xbf16>
    %c0_50 = arith.constant 0 : index
    %c0_51 = arith.constant 0 : index
    %179 = vector.load %arg2[%c0_50, %c0_51] : memref<32x128xbf16, #tpu.memory_space<vmem>>, vector<32x128xbf16>
    %cst_52 = arith.constant dense<0.000000e+00> : vector<8x128xf32>
    %180 = tpu.matmul %178, %179, %cst_52 {dimension_numbers = #tpu.dot_dimension_numbers<[1], [0], [0], [1], [0, 0, 1, 1], [], []>} : vector<8x32xbf16>, vector<32x128xbf16>, vector<8x128xf32> -> vector<8x128xf32>
    %181 = arith.addf %177, %180 : vector<8x128xf32>
    %182 = vector.extract_strided_slice %181 {offsets = [0, 0], sizes = [8, 32], strides = [1, 1]} : vector<8x128xf32> to vector<8x32xf32>
    %183 = arith.negf %182 : vector<8x32xf32>
    %184 = math.exp %183 : vector<8x32xf32>
    %cst_53 = arith.constant 1.000000e+00 : f32
    %185 = vector.broadcast %cst_53 : f32 to vector<8x32xf32>
    %186 = arith.addf %185, %184 : vector<8x32xf32>
    %187 = arith.divf %185, %186 : vector<8x32xf32>
    %188 = vector.extract_strided_slice %181 {offsets = [0, 32], sizes = [8, 32], strides = [1, 1]} : vector<8x128xf32> to vector<8x32xf32>
    %189 = arith.negf %188 : vector<8x32xf32>
    %190 = math.exp %189 : vector<8x32xf32>
    %cst_54 = arith.constant 1.000000e+00 : f32
    %191 = vector.broadcast %cst_54 : f32 to vector<8x32xf32>
    %192 = arith.addf %191, %190 : vector<8x32xf32>
    %193 = arith.divf %191, %192 : vector<8x32xf32>
    %194 = vector.extract_strided_slice %181 {offsets = [0, 64], sizes = [8, 32], strides = [1, 1]} : vector<8x128xf32> to vector<8x32xf32>
    %195 = math.tanh %194 : vector<8x32xf32>
    %196 = vector.extract_strided_slice %181 {offsets = [0, 96], sizes = [8, 32], strides = [1, 1]} : vector<8x128xf32> to vector<8x32xf32>
    %197 = arith.negf %196 : vector<8x32xf32>
    %198 = math.exp %197 : vector<8x32xf32>
    %cst_55 = arith.constant 1.000000e+00 : f32
    %199 = vector.broadcast %cst_55 : f32 to vector<8x32xf32>
    %200 = arith.addf %199, %198 : vector<8x32xf32>
    %201 = arith.divf %199, %200 : vector<8x32xf32>
    %202 = arith.mulf %193, %171 : vector<8x32xf32>
    %203 = arith.mulf %187, %195 : vector<8x32xf32>
    %204 = arith.addf %202, %203 : vector<8x32xf32>
    %205 = math.tanh %204 : vector<8x32xf32>
    %206 = arith.mulf %201, %205 : vector<8x32xf32>
    %c6_i32 = arith.constant 6 : i32
    %c8_i32_56 = arith.constant 8 : i32
    %207 = arith.muli %c6_i32, %c8_i32_56 : i32
    %208 = tpu.assume_multiple %207, 8 : i32
    %209 = arith.index_cast %208 : i32 to index
    %c0_57 = arith.constant 0 : index
    %210 = vector.load %arg7[%209, %c0_57] : memref<64x128xf32, #tpu.memory_space<vmem>>, vector<8x128xf32>
    %211 = arith.truncf %206 : vector<8x32xf32> to vector<8x32xbf16>
    %c0_58 = arith.constant 0 : index
    %c0_59 = arith.constant 0 : index
    %212 = vector.load %arg2[%c0_58, %c0_59] : memref<32x128xbf16, #tpu.memory_space<vmem>>, vector<32x128xbf16>
    %cst_60 = arith.constant dense<0.000000e+00> : vector<8x128xf32>
    %213 = tpu.matmul %211, %212, %cst_60 {dimension_numbers = #tpu.dot_dimension_numbers<[1], [0], [0], [1], [0, 0, 1, 1], [], []>} : vector<8x32xbf16>, vector<32x128xbf16>, vector<8x128xf32> -> vector<8x128xf32>
    %214 = arith.addf %210, %213 : vector<8x128xf32>
    %215 = vector.extract_strided_slice %214 {offsets = [0, 0], sizes = [8, 32], strides = [1, 1]} : vector<8x128xf32> to vector<8x32xf32>
    %216 = arith.negf %215 : vector<8x32xf32>
    %217 = math.exp %216 : vector<8x32xf32>
    %cst_61 = arith.constant 1.000000e+00 : f32
    %218 = vector.broadcast %cst_61 : f32 to vector<8x32xf32>
    %219 = arith.addf %218, %217 : vector<8x32xf32>
    %220 = arith.divf %218, %219 : vector<8x32xf32>
    %221 = vector.extract_strided_slice %214 {offsets = [0, 32], sizes = [8, 32], strides = [1, 1]} : vector<8x128xf32> to vector<8x32xf32>
    %222 = arith.negf %221 : vector<8x32xf32>
    %223 = math.exp %222 : vector<8x32xf32>
    %cst_62 = arith.constant 1.000000e+00 : f32
    %224 = vector.broadcast %cst_62 : f32 to vector<8x32xf32>
    %225 = arith.addf %224, %223 : vector<8x32xf32>
    %226 = arith.divf %224, %225 : vector<8x32xf32>
    %227 = vector.extract_strided_slice %214 {offsets = [0, 64], sizes = [8, 32], strides = [1, 1]} : vector<8x128xf32> to vector<8x32xf32>
    %228 = math.tanh %227 : vector<8x32xf32>
    %229 = vector.extract_strided_slice %214 {offsets = [0, 96], sizes = [8, 32], strides = [1, 1]} : vector<8x128xf32> to vector<8x32xf32>
    %230 = arith.negf %229 : vector<8x32xf32>
    %231 = math.exp %230 : vector<8x32xf32>
    %cst_63 = arith.constant 1.000000e+00 : f32
    %232 = vector.broadcast %cst_63 : f32 to vector<8x32xf32>
    %233 = arith.addf %232, %231 : vector<8x32xf32>
    %234 = arith.divf %232, %233 : vector<8x32xf32>
    %235 = arith.mulf %226, %204 : vector<8x32xf32>
    %236 = arith.mulf %220, %228 : vector<8x32xf32>
    %237 = arith.addf %235, %236 : vector<8x32xf32>
    %238 = math.tanh %237 : vector<8x32xf32>
    %239 = arith.mulf %234, %238 : vector<8x32xf32>
    %c7_i32 = arith.constant 7 : i32
    %c8_i32_64 = arith.constant 8 : i32
    %240 = arith.muli %c7_i32, %c8_i32_64 : i32
    %241 = tpu.assume_multiple %240, 8 : i32
    %242 = arith.index_cast %241 : i32 to index
    %c0_65 = arith.constant 0 : index
    %243 = vector.load %arg7[%242, %c0_65] : memref<64x128xf32, #tpu.memory_space<vmem>>, vector<8x128xf32>
    %244 = arith.truncf %239 : vector<8x32xf32> to vector<8x32xbf16>
    %c0_66 = arith.constant 0 : index
    %c0_67 = arith.constant 0 : index
    %245 = vector.load %arg2[%c0_66, %c0_67] : memref<32x128xbf16, #tpu.memory_space<vmem>>, vector<32x128xbf16>
    %cst_68 = arith.constant dense<0.000000e+00> : vector<8x128xf32>
    %246 = tpu.matmul %244, %245, %cst_68 {dimension_numbers = #tpu.dot_dimension_numbers<[1], [0], [0], [1], [0, 0, 1, 1], [], []>} : vector<8x32xbf16>, vector<32x128xbf16>, vector<8x128xf32> -> vector<8x128xf32>
    %247 = arith.addf %243, %246 : vector<8x128xf32>
    %248 = vector.extract_strided_slice %247 {offsets = [0, 0], sizes = [8, 32], strides = [1, 1]} : vector<8x128xf32> to vector<8x32xf32>
    %249 = arith.negf %248 : vector<8x32xf32>
    %250 = math.exp %249 : vector<8x32xf32>
    %cst_69 = arith.constant 1.000000e+00 : f32
    %251 = vector.broadcast %cst_69 : f32 to vector<8x32xf32>
    %252 = arith.addf %251, %250 : vector<8x32xf32>
    %253 = arith.divf %251, %252 : vector<8x32xf32>
    %254 = vector.extract_strided_slice %247 {offsets = [0, 32], sizes = [8, 32], strides = [1, 1]} : vector<8x128xf32> to vector<8x32xf32>
    %255 = arith.negf %254 : vector<8x32xf32>
    %256 = math.exp %255 : vector<8x32xf32>
    %cst_70 = arith.constant 1.000000e+00 : f32
    %257 = vector.broadcast %cst_70 : f32 to vector<8x32xf32>
    %258 = arith.addf %257, %256 : vector<8x32xf32>
    %259 = arith.divf %257, %258 : vector<8x32xf32>
    %260 = vector.extract_strided_slice %247 {offsets = [0, 64], sizes = [8, 32], strides = [1, 1]} : vector<8x128xf32> to vector<8x32xf32>
    %261 = math.tanh %260 : vector<8x32xf32>
    %262 = vector.extract_strided_slice %247 {offsets = [0, 96], sizes = [8, 32], strides = [1, 1]} : vector<8x128xf32> to vector<8x32xf32>
    %263 = arith.negf %262 : vector<8x32xf32>
    %264 = math.exp %263 : vector<8x32xf32>
    %cst_71 = arith.constant 1.000000e+00 : f32
    %265 = vector.broadcast %cst_71 : f32 to vector<8x32xf32>
    %266 = arith.addf %265, %264 : vector<8x32xf32>
    %267 = arith.divf %265, %266 : vector<8x32xf32>
    %268 = arith.mulf %259, %237 : vector<8x32xf32>
    %269 = arith.mulf %253, %261 : vector<8x32xf32>
    %270 = arith.addf %268, %269 : vector<8x32xf32>
    %271 = math.tanh %270 : vector<8x32xf32>
    %272 = arith.mulf %267, %271 : vector<8x32xf32>
    %c8_i32_72 = arith.constant 8 : i32
    %273 = arith.truncf %272 : vector<8x32xf32> to vector<8x32xbf16>
    %c0_73 = arith.constant 0 : index
    %c0_74 = arith.constant 0 : index
    %274 = vector.load %arg4[%c0_73, %c0_74] : memref<32x128xbf16, #tpu.memory_space<vmem>>, vector<32x128xbf16>
    %cst_75 = arith.constant dense<0.000000e+00> : vector<8x128xf32>
    %275 = tpu.matmul %273, %274, %cst_75 {dimension_numbers = #tpu.dot_dimension_numbers<[1], [0], [0], [1], [0, 0, 1, 1], [], []>} : vector<8x32xbf16>, vector<32x128xbf16>, vector<8x128xf32> -> vector<8x128xf32>
    %c0_76 = arith.constant 0 : index
    %c0_77 = arith.constant 0 : index
    %276 = vector.load %arg5[%c0_76, %c0_77] : memref<1x128xf32, #tpu.memory_space<vmem>>, vector<1x128xf32>
    %277 = vector.broadcast %276 : vector<1x128xf32> to vector<8x128xf32>
    %278 = arith.addf %275, %277 : vector<8x128xf32>
    %c0_78 = arith.constant 0 : index
    %c0_79 = arith.constant 0 : index
    %279 = vector.load %arg6[%c0_78, %c0_79] : memref<8x128xf32, #tpu.memory_space<vmem>>, vector<8x128xf32>
    tpu.vector_store %arg6[%c0_78, %c0_79], %278 {strides = array<i32>} : memref<8x128xf32, #tpu.memory_space<vmem>>, vector<8x128xf32>,
    return
  }
}

</mosaic_0001>

<llo_original>
// kernel: tpu_custom_call.1
$region0: #{tpu_custom_call.1}
  #allocation0 [shape = 'u32[]', space=smem, size = 0x4, offset = 0x4, fixed_abs, tag = 'smem constant byte address 0x4 - core index']
  #allocation1 [shape = 'u32[144,128]{1,0:T(1,128)}', space=vmem, size = 0x12000, scoped, tag = 'internal scratch']
  #allocation2 [shape = 'f32[64,128]{1,0:T(8,128)}', space=vmem, size = 0x8000, scoped, tag = 'scratch operand']
  %s0 = inlined_call_operand.vmem [shape: bf16[64,16], index: 0, kind: input, shape index: {}]
  %s1 = inlined_call_operand.vmem [shape: bf16[16,128], index: 1, kind: input, shape index: {}]
  %s2 = inlined_call_operand.vmem [shape: bf16[32,128], index: 2, kind: input, shape index: {}]
  %s3 = inlined_call_operand.vmem [shape: f32[1,128], index: 3, kind: input, shape index: {}]
  %s4 = inlined_call_operand.vmem [shape: bf16[32,128], index: 4, kind: input, shape index: {}]
  %s5 = inlined_call_operand.vmem [shape: f32[1,128], index: 5, kind: input, shape index: {}]
  %s6 = inlined_call_operand.hbm [shape: f32[8,128], index: 6, kind: output, shape index: {}]
  %s7 = sld [smem:[#allocation0]]
  $region34: #{tpu_custom_call.1} parent=0
    _
  %s9 = ssub.s32 1, %s7
  %s10 = scalar_select 0, %s9, %s7
  $region1: #{tpu_custom_call.1} parent=0
    #allocation3 [shape = 'u8[4096]{0}', space=vmem, size = 0x1000, scoped, tag = 'output window, operand 0, single buffered']
    #allocation4 [shape = 's32[1]{0}', space=sflag, size = 0x4, scoped, tag = 'scoped memory for tpu_custom_call.1']
    %11 = vsyncpa [#allocation4], 0
    // Predicated region
    $region2: #{tpu_custom_call.1} parent=1 // pred_check
      _
    $region3: #{tpu_custom_call.1} parent=1 // pred_check_branch
      %13 = sbr.rel (0) target = $region5
    $region4: #{tpu_custom_call.1} parent=1 // pred_region
      _
    $region5: #{tpu_custom_call.1} parent=1 // pred_fallthru
      _
    // Predicated region
    $region6: #{tpu_custom_call.1} parent=1 // pred_check
      _
    $region7: #{tpu_custom_call.1} parent=1 // pred_check_branch
      %15 = sbr.rel (0) target = $region9
    $region8: #{tpu_custom_call.1} parent=1 // pred_region
      _
    $region9: #{tpu_custom_call.1} parent=1 // pred_fallthru
      _
    // Predicated region
    $region10: #{tpu_custom_call.1} parent=1 // pred_check
      _
    $region11: #{tpu_custom_call.1} parent=1 // pred_check_branch
      %17 = sbr.rel (0) target = $region13
    $region12: #{tpu_custom_call.1} parent=1 // pred_region
      _
    $region13: #{tpu_custom_call.1} parent=1 // pred_fallthru
      _
    // Predicated region
    $region14: #{tpu_custom_call.1} parent=1 // pred_check
      _
    $region15: #{tpu_custom_call.1} parent=1 // pred_check_branch
      %19 = sbr.rel (0) target = $region17
    $region16: #{tpu_custom_call.1} parent=1 // pred_region
      _
    $region17: #{tpu_custom_call.1} parent=1 // pred_fallthru
      _
    // Predicated region
    $region18: #{tpu_custom_call.1} parent=1 // pred_check
      _
    $region19: #{tpu_custom_call.1} parent=1 // pred_check_branch
      %21 = sbr.rel (0) target = $region21
    $region20: #{tpu_custom_call.1} parent=1 // pred_region
      _
    $region21: #{tpu_custom_call.1} parent=1 // pred_fallthru
      _
    // Predicated region
    $region22: #{tpu_custom_call.1} parent=1 // pred_check
      _
    $region23: #{tpu_custom_call.1} parent=1 // pred_check_branch
      %23 = sbr.rel (0) target = $region25
    $region24: #{tpu_custom_call.1} parent=1 // pred_region
      _
    $region25: #{tpu_custom_call.1} parent=1 // pred_fallthru
      _
    %v25 = vld [vmem:[%s0] sm:$0xf]
    %v26 = vld [vmem:[%s0 + $0x4] sm:$0xf]
    %v27 = vld [vmem:[%s0 + $0x8] sm:$0xf]
    %v28 = vld [vmem:[%s0 + $0xc] sm:$0xf]
    %v29 = vld [vmem:[%s0 + $0x10] sm:$0xf]
    %v30 = vld [vmem:[%s0 + $0x14] sm:$0xf]
    %v31 = vld [vmem:[%s0 + $0x18] sm:$0xf]
    %v32 = vld [vmem:[%s0 + $0x1c] sm:$0xf]
    %v33 = vld [vmem:[%s1] sm:$0xf]
    %v34 = vld [vmem:[%s1 + $0x4] sm:$0xf]
    %v35 = vld [vmem:[%s3] sm:$0x1]
    %v37 = vlaneseq
    %v38 = vshrl.u32 %v37, 7
    %v39 = vsub.s32 0, %v38
    %v40 = vrot.slane %v35, %v39
    %v50 = vunpack.c.l.b16 %v25
    %v51 = vunpack.c.l.b16 %v26
    %v52 = vunpack.c.l.b16 %v27
    %v53 = vunpack.c.l.b16 %v28
    %v54 = vunpack.c.l.b16 %v29
    %v55 = vunpack.c.l.b16 %v30
    %v56 = vunpack.c.l.b16 %v31
    %v57 = vunpack.c.l.b16 %v32
    %v58 = vpack.c.b16 %v51, %v50
    %v59 = vpack.c.b16 %v53, %v52
    %v60 = vpack.c.b16 %v55, %v54
    %v61 = vpack.c.b16 %v57, %v56
    %v64 = vunpack.c.l.b16 %v33
    %v65 = vunpack.c.l.b16 %v34
    %v66 = vpack.c.b16 %v65, %v64
    %vm68 = vcmask 130048
    %v70 = vsel %vm68, %v58, 0
    %v73 = vsel %vm68, %v59, 0
    %v76 = vsel %vm68, %v60, 0
    %v79 = vsel %vm68, %v61, 0
    %81 = vmatprep.subr.bf16.mxu0 0
    %82 = vmatpush1.bf16.msra.mxu0 %v66
    %83 = vmatprep.subr.bf16.mxu0 0
    %84 = vmatpush1.bf16.msra.mxu0 0
    %85 = vmatprep.subr.bf16.mxu0 0
    %86 = vmatpush1.bf16.msra.mxu0 0
    %87 = vmatprep.subr.bf16.mxu0 0
    %88 = vmatpush1.bf16.msra.mxu0 0
    %89 = vmatprep.subr.bf16.mxu0 0
    %90 = vmatpush1.bf16.msra.mxu0 0
    %91 = vmatprep.subr.bf16.mxu0 0
    %92 = vmatpush1.bf16.msra.mxu0 0
    %93 = vmatprep.subr.bf16.mxu0 0
    %94 = vmatpush1.bf16.msra.mxu0 0
    %95 = vmatprep.subr.bf16.mxu0 0
    %96 = vmatpush1.bf16.msra.mxu0 0
    %97 = vmatprep.subr.bf16.mxu0 0
    %98 = vmatpush1.bf16.msra.mxu0 0
    %99 = vmatprep.subr.bf16.mxu0 0
    %100 = vmatpush1.bf16.msra.mxu0 0
    %101 = vmatprep.subr.bf16.mxu0 0
    %102 = vmatpush1.bf16.msra.mxu0 0
    %103 = vmatprep.subr.bf16.mxu0 0
    %104 = vmatpush1.bf16.msra.mxu0 0
    %105 = vmatprep.subr.bf16.mxu0 0
    %106 = vmatpush1.bf16.msra.mxu0 0
    %107 = vmatprep.subr.bf16.mxu0 0
    %108 = vmatpush1.bf16.msra.mxu0 0
    %109 = vmatprep.subr.bf16.mxu0 0
    %110 = vmatpush1.bf16.msra.mxu0 0
    %111 = vmatprep.subr.bf16.mxu0 0
    %112 = vmatpush1.bf16.msra.mxu0 0
    %113 = vmatprep.mubr.bf16.mxu0 0
    %114 = vmatmul.mubr.bf16.gmra.mrb[0].mxu0 %v70
    %v115 = vpop.f32.mrb[0].mxu0
    %v116 = vadd.f32 %v40, %v115
    %v117 = vpop.f32.mrb[0].mxu0
    %v118 = vpop.f32.mrb[0].mxu0
    %v119 = vadd.f32 %v40, %v118
    %v120 = vpop.f32.mrb[0].mxu0
    %121 = vmatprep.mubr.bf16.mxu0 0
    %122 = vmatmul.mubr.bf16.gmra.mrb[0].mxu0 %v73
    %v123 = vpop.f32.mrb[0].mxu0
    %v124 = vadd.f32 %v40, %v123
    %v125 = vpop.f32.mrb[0].mxu0
    %v126 = vpop.f32.mrb[0].mxu0
    %v127 = vadd.f32 %v40, %v126
    %v128 = vpop.f32.mrb[0].mxu0
    %129 = vmatprep.mubr.bf16.mxu0 0
    %130 = vmatmul.mubr.bf16.gmra.mrb[0].mxu0 %v76
    %v131 = vpop.f32.mrb[0].mxu0
    %v132 = vadd.f32 %v40, %v131
    %v133 = vpop.f32.mrb[0].mxu0
    %v134 = vpop.f32.mrb[0].mxu0
    %v135 = vadd.f32 %v40, %v134
    %v136 = vpop.f32.mrb[0].mxu0
    %137 = vmatprep.mubr.bf16.mxu0 0
    %138 = vmatmul.mubr.bf16.gmra.mrb[0].mxu0 %v79
    %v139 = vpop.f32.mrb[0].mxu0
    %v140 = vadd.f32 %v40, %v139
    %v141 = vpop.f32.mrb[0].mxu0
    %v142 = vpop.f32.mrb[0].mxu0
    %v143 = vadd.f32 %v40, %v142
    %v144 = vpop.f32.mrb[0].mxu0
    %145 = vdwg.mxu0
    %146 = vst [vmem:[#allocation2] sm:$0xff] %v116
    %147 = vst [vmem:[#allocation2 + $0x8] sm:$0xff] %v119
    %148 = vst [vmem:[#allocation2 + $0x10] sm:$0xff] %v124
    %149 = vst [vmem:[#allocation2 + $0x18] sm:$0xff] %v127
    %150 = vst [vmem:[#allocation2 + $0x20] sm:$0xff] %v132
    %151 = vst [vmem:[#allocation2 + $0x28] sm:$0xff] %v135
    %152 = vst [vmem:[#allocation2 + $0x30] sm:$0xff] %v140
    %153 = vst [vmem:[#allocation2 + $0x38] sm:$0xff] %v143
    %v154 = vld [vmem:[#allocation2] sm:$0xff]
    %v155 = vld [vmem:[%s2] sm:$0xf]
    %v156 = vld [vmem:[%s2 + $0x4] sm:$0xf]
    %v157 = vld [vmem:[%s2 + $0x8] sm:$0xf]
    %v158 = vld [vmem:[%s2 + $0xc] sm:$0xf]
    %v163 = vunpack.c.l.b16 %v155
    %v164 = vunpack.c.l.b16 %v156
    %v165 = vunpack.c.l.b16 %v157
    %v166 = vunpack.c.l.b16 %v158
    %v167 = vpack.c.b16 %v164, %v163
    %v168 = vpack.c.b16 %v166, %v165
    %vm171 = vcmask 261120
    %v173 = vsel %vm171, 0, 0
    %175 = vmatprep.subr.bf16.mxu0 0
    %176 = vmatpush1.bf16.msra.mxu0 %v167
    %177 = vmatprep.subr.bf16.mxu0 0
    %178 = vmatpush1.bf16.msra.mxu0 %v168
    %179 = vmatprep.subr.bf16.mxu0 0
    %180 = vmatpush1.bf16.msra.mxu0 0
    %181 = vmatprep.subr.bf16.mxu0 0
    %182 = vmatpush1.bf16.msra.mxu0 0
    %183 = vmatprep.subr.bf16.mxu0 0
    %184 = vmatpush1.bf16.msra.mxu0 0
    %185 = vmatprep.subr.bf16.mxu0 0
    %186 = vmatpush1.bf16.msra.mxu0 0
    %187 = vmatprep.subr.bf16.mxu0 0
    %188 = vmatpush1.bf16.msra.mxu0 0
    %189 = vmatprep.subr.bf16.mxu0 0
    %190 = vmatpush1.bf16.msra.mxu0 0
    %191 = vmatprep.subr.bf16.mxu0 0
    %192 = vmatpush1.bf16.msra.mxu0 0
    %193 = vmatprep.subr.bf16.mxu0 0
    %194 = vmatpush1.bf16.msra.mxu0 0
    %195 = vmatprep.subr.bf16.mxu0 0
    %196 = vmatpush1.bf16.msra.mxu0 0
    %197 = vmatprep.subr.bf16.mxu0 0
    %198 = vmatpush1.bf16.msra.mxu0 0
    %199 = vmatprep.subr.bf16.mxu0 0
    %200 = vmatpush1.bf16.msra.mxu0 0
    %201 = vmatprep.subr.bf16.mxu0 0
    %202 = vmatpush1.bf16.msra.mxu0 0
    %203 = vmatprep.subr.bf16.mxu0 0
    %204 = vmatpush1.bf16.msra.mxu0 0
    %205 = vmatprep.subr.bf16.mxu0 0
    %206 = vmatpush1.bf16.msra.mxu0 0
    %207 = vmatprep.mubr.bf16.mxu0 0
    %208 = vmatmul.mubr.bf16.gmra.mrb[0].mxu0 %v173
    %v209 = vpop.f32.mrb[0].mxu0
    %v210 = vadd.f32 0.0, %v209
    %v211 = vpop.f32.mrb[0].mxu0
    %v212 = vpop.f32.mrb[0].mxu0
    %v213 = vpop.f32.mrb[0].mxu0
    %214 = vdwg.mxu0
    %v215 = vadd.f32 %v154, %v210
    %v216 = vxor.u32 %v215, 2147483648
    %v217 = vmul.f32 %v216, 1.442695
    %v218 = vpow.pop %v217
    %v219 = vadd.f32 %v218, 1.0
    %v220 = vrcp.pop %v219
    %v221 = vmul.f32 1.0, %v220
    %v222 = vtanh.pop %v215
    %v223 = vmul.f32 %v221, 0.0
    %225 = vrot.lane.b32.xlu0 %v222, 64
    %v226 = vpop.permute.xlu0 %225
    %v228 = vmul.f32 %v221, %v226
    %230 = vrot.lane.b32.xlu0 %v228, 32
    %v231 = vpop.permute.xlu0 %230
    %v233 = vadd.f32 %v223, %v231
    %v234 = vtanh.pop %v233
    %236 = vrot.lane.b32.xlu0 %v234, 64
    %v237 = vpop.permute.xlu0 %236
    %v239 = vmul.f32 %v221, %v237
    %s240 = scalar_lea.vmem [#allocation2], 8
    %v241 = vld [vmem:[%s240] sm:$0xff]
    %v242 = vpack.c.bf16 %v239, %v239
    %244 = vrot.lane.b32.xlu0 %v242, 32
    %v245 = vpop.permute.xlu0 %244
    %v247 = vsel %vm171, %v245, 0
    %249 = vmatprep.subr.bf16.mxu0 0
    %250 = vmatpush1.bf16.msra.mxu0 %v167
    %251 = vmatprep.subr.bf16.mxu0 0
    %252 = vmatpush1.bf16.msra.mxu0 %v168
    %253 = vmatprep.subr.bf16.mxu0 0
    %254 = vmatpush1.bf16.msra.mxu0 0
    %255 = vmatprep.subr.bf16.mxu0 0
    %256 = vmatpush1.bf16.msra.mxu0 0
    %257 = vmatprep.subr.bf16.mxu0 0
    %258 = vmatpush1.bf16.msra.mxu0 0
    %259 = vmatprep.subr.bf16.mxu0 0
    %260 = vmatpush1.bf16.msra.mxu0 0
    %261 = vmatprep.subr.bf16.mxu0 0
    %262 = vmatpush1.bf16.msra.mxu0 0
    %263 = vmatprep.subr.bf16.mxu0 0
    %264 = vmatpush1.bf16.msra.mxu0 0
    %265 = vmatprep.subr.bf16.mxu0 0
    %266 = vmatpush1.bf16.msra.mxu0 0
    %267 = vmatprep.subr.bf16.mxu0 0
    %268 = vmatpush1.bf16.msra.mxu0 0
    %269 = vmatprep.subr.bf16.mxu0 0
    %270 = vmatpush1.bf16.msra.mxu0 0
    %271 = vmatprep.subr.bf16.mxu0 0
    %272 = vmatpush1.bf16.msra.mxu0 0
    %273 = vmatprep.subr.bf16.mxu0 0
    %274 = vmatpush1.bf16.msra.mxu0 0
    %275 = vmatprep.subr.bf16.mxu0 0
    %276 = vmatpush1.bf16.msra.mxu0 0
    %277 = vmatprep.subr.bf16.mxu0 0
    %278 = vmatpush1.bf16.msra.mxu0 0
    %279 = vmatprep.subr.bf16.mxu0 0
    %280 = vmatpush1.bf16.msra.mxu0 0
    %281 = vmatprep.mubr.bf16.mxu0 0
    %282 = vmatmul.mubr.bf16.gmra.mrb[0].mxu0 %v247
    %v283 = vpop.f32.mrb[0].mxu0
    %v284 = vadd.f32 0.0, %v283
    %v285 = vpop.f32.mrb[0].mxu0
    %v286 = vpop.f32.mrb[0].mxu0
    %v287 = vpop.f32.mrb[0].mxu0
    %288 = vdwg.mxu0
    %v289 = vadd.f32 %v241, %v284
    %v290 = vxor.u32 %v289, 2147483648
    %v291 = vmul.f32 %v290, 1.442695
    %v292 = vpow.pop %v291
    %v293 = vadd.f32 %v292, 1.0
    %v294 = vrcp.pop %v293
    %v295 = vmul.f32 1.0, %v294
    %v296 = vtanh.pop %v289
    %v297 = vmul.f32 %v295, %v233
    %299 = vrot.lane.b32.xlu0 %v296, 64
    %v300 = vpop.permute.xlu0 %299
    %v302 = vmul.f32 %v295, %v300
    %304 = vrot.lane.b32.xlu0 %v302, 32
    %v305 = vpop.permute.xlu0 %304
    %v307 = vadd.f32 %v297, %v305
    %v308 = vtanh.pop %v307
    %310 = vrot.lane.b32.xlu0 %v308, 64
    %v311 = vpop.permute.xlu0 %310
    %v313 = vmul.f32 %v295, %v311
    %s314 = scalar_lea.vmem [#allocation2], 16
    %v315 = vld [vmem:[%s314] sm:$0xff]
    %v316 = vpack.c.bf16 %v313, %v313
    %318 = vrot.lane.b32.xlu0 %v316, 32
    %v319 = vpop.permute.xlu0 %318
    %v321 = vsel %vm171, %v319, 0
    %323 = vmatprep.subr.bf16.mxu0 0
    %324 = vmatpush1.bf16.msra.mxu0 %v167
    %325 = vmatprep.subr.bf16.mxu0 0
    %326 = vmatpush1.bf16.msra.mxu0 %v168
    %327 = vmatprep.subr.bf16.mxu0 0
    %328 = vmatpush1.bf16.msra.mxu0 0
    %329 = vmatprep.subr.bf16.mxu0 0
    %330 = vmatpush1.bf16.msra.mxu0 0
    %331 = vmatprep.subr.bf16.mxu0 0
    %332 = vmatpush1.bf16.msra.mxu0 0
    %333 = vmatprep.subr.bf16.mxu0 0
    %334 = vmatpush1.bf16.msra.mxu0 0
    %335 = vmatprep.subr.bf16.mxu0 0
    %336 = vmatpush1.bf16.msra.mxu0 0
    %337 = vmatprep.subr.bf16.mxu0 0
    %338 = vmatpush1.bf16.msra.mxu0 0
    %339 = vmatprep.subr.bf16.mxu0 0
    %340 = vmatpush1.bf16.msra.mxu0 0
    %341 = vmatprep.subr.bf16.mxu0 0
    %342 = vmatpush1.bf16.msra.mxu0 0
    %343 = vmatprep.subr.bf16.mxu0 0
    %344 = vmatpush1.bf16.msra.mxu0 0
    %345 = vmatprep.subr.bf16.mxu0 0
    %346 = vmatpush1.bf16.msra.mxu0 0
    %347 = vmatprep.subr.bf16.mxu0 0
    %348 = vmatpush1.bf16.msra.mxu0 0
    %349 = vmatprep.subr.bf16.mxu0 0
    %350 = vmatpush1.bf16.msra.mxu0 0
    %351 = vmatprep.subr.bf16.mxu0 0
    %352 = vmatpush1.bf16.msra.mxu0 0
    %353 = vmatprep.subr.bf16.mxu0 0
    %354 = vmatpush1.bf16.msra.mxu0 0
    %355 = vmatprep.mubr.bf16.mxu0 0
    %356 = vmatmul.mubr.bf16.gmra.mrb[0].mxu0 %v321
    %v357 = vpop.f32.mrb[0].mxu0
    %v358 = vadd.f32 0.0, %v357
    %v359 = vpop.f32.mrb[0].mxu0
    %v360 = vpop.f32.mrb[0].mxu0
    %v361 = vpop.f32.mrb[0].mxu0
    %362 = vdwg.mxu0
    %v363 = vadd.f32 %v315, %v358
    %v364 = vxor.u32 %v363, 2147483648
    %v365 = vmul.f32 %v364, 1.442695
    %v366 = vpow.pop %v365
    %v367 = vadd.f32 %v366, 1.0
    %v368 = vrcp.pop %v367
    %v369 = vmul.f32 1.0, %v368
    %v370 = vtanh.pop %v363
    %v371 = vmul.f32 %v369, %v307
    %373 = vrot.lane.b32.xlu0 %v370, 64
    %v374 = vpop.permute.xlu0 %373
    %v376 = vmul.f32 %v369, %v374
    %378 = vrot.lane.b32.xlu0 %v376, 32
    %v379 = vpop.permute.xlu0 %378
    %v381 = vadd.f32 %v371, %v379
    %v382 = vtanh.pop %v381
    %384 = vrot.lane.b32.xlu0 %v382, 64
    %v385 = vpop.permute.xlu0 %384
    %v387 = vmul.f32 %v369, %v385
    %s388 = scalar_lea.vmem [#allocation2], 24
    %v389 = vld [vmem:[%s388] sm:$0xff]
    %v390 = vpack.c.bf16 %v387, %v387
    %392 = vrot.lane.b32.xlu0 %v390, 32
    %v393 = vpop.permute.xlu0 %392
    %v395 = vsel %vm171, %v393, 0
    %397 = vmatprep.subr.bf16.mxu0 0
    %398 = vmatpush1.bf16.msra.mxu0 %v167
    %399 = vmatprep.subr.bf16.mxu0 0
    %400 = vmatpush1.bf16.msra.mxu0 %v168
    %401 = vmatprep.subr.bf16.mxu0 0
    %402 = vmatpush1.bf16.msra.mxu0 0
    %403 = vmatprep.subr.bf16.mxu0 0
    %404 = vmatpush1.bf16.msra.mxu0 0
    %405 = vmatprep.subr.bf16.mxu0 0
    %406 = vmatpush1.bf16.msra.mxu0 0
    %407 = vmatprep.subr.bf16.mxu0 0
    %408 = vmatpush1.bf16.msra.mxu0 0
    %409 = vmatprep.subr.bf16.mxu0 0
    %410 = vmatpush1.bf16.msra.mxu0 0
    %411 = vmatprep.subr.bf16.mxu0 0
    %412 = vmatpush1.bf16.msra.mxu0 0
    %413 = vmatprep.subr.bf16.mxu0 0
    %414 = vmatpush1.bf16.msra.mxu0 0
    %415 = vmatprep.subr.bf16.mxu0 0
    %416 = vmatpush1.bf16.msra.mxu0 0
    %417 = vmatprep.subr.bf16.mxu0 0
    %418 = vmatpush1.bf16.msra.mxu0 0
    %419 = vmatprep.subr.bf16.mxu0 0
    %420 = vmatpush1.bf16.msra.mxu0 0
    %421 = vmatprep.subr.bf16.mxu0 0
    %422 = vmatpush1.bf16.msra.mxu0 0
    %423 = vmatprep.subr.bf16.mxu0 0
    %424 = vmatpush1.bf16.msra.mxu0 0
    %425 = vmatprep.subr.bf16.mxu0 0
    %426 = vmatpush1.bf16.msra.mxu0 0
    %427 = vmatprep.subr.bf16.mxu0 0
    %428 = vmatpush1.bf16.msra.mxu0 0
    %429 = vmatprep.mubr.bf16.mxu0 0
    %430 = vmatmul.mubr.bf16.gmra.mrb[0].mxu0 %v395
    %v431 = vpop.f32.mrb[0].mxu0
    %v432 = vadd.f32 0.0, %v431
    %v433 = vpop.f32.mrb[0].mxu0
    %v434 = vpop.f32.mrb[0].mxu0
    %v435 = vpop.f32.mrb[0].mxu0
    %436 = vdwg.mxu0
    %v437 = vadd.f32 %v389, %v432
    %v438 = vxor.u32 %v437, 2147483648
    %v439 = vmul.f32 %v438, 1.442695
    %v440 = vpow.pop %v439
    %v441 = vadd.f32 %v440, 1.0
    %v442 = vrcp.pop %v441
    %v443 = vmul.f32 1.0, %v442
    %v444 = vtanh.pop %v437
    %v445 = vmul.f32 %v443, %v381
    %447 = vrot.lane.b32.xlu0 %v444, 64
    %v448 = vpop.permute.xlu0 %447
    %v450 = vmul.f32 %v443, %v448
    %452 = vrot.lane.b32.xlu0 %v450, 32
    %v453 = vpop.permute.xlu0 %452
    %v455 = vadd.f32 %v445, %v453
    %v456 = vtanh.pop %v455
    %458 = vrot.lane.b32.xlu0 %v456, 64
    %v459 = vpop.permute.xlu0 %458
    %v461 = vmul.f32 %v443, %v459
    %s462 = scalar_lea.vmem [#allocation2], 32
    %v463 = vld [vmem:[%s462] sm:$0xff]
    %v464 = vpack.c.bf16 %v461, %v461
    %466 = vrot.lane.b32.xlu0 %v464, 32
    %v467 = vpop.permute.xlu0 %466
    %v469 = vsel %vm171, %v467, 0
    %471 = vmatprep.subr.bf16.mxu0 0
    %472 = vmatpush1.bf16.msra.mxu0 %v167
    %473 = vmatprep.subr.bf16.mxu0 0
    %474 = vmatpush1.bf16.msra.mxu0 %v168
    %475 = vmatprep.subr.bf16.mxu0 0
    %476 = vmatpush1.bf16.msra.mxu0 0
    %477 = vmatprep.subr.bf16.mxu0 0
    %478 = vmatpush1.bf16.msra.mxu0 0
    %479 = vmatprep.subr.bf16.mxu0 0
    %480 = vmatpush1.bf16.msra.mxu0 0
    %481 = vmatprep.subr.bf16.mxu0 0
    %482 = vmatpush1.bf16.msra.mxu0 0
    %483 = vmatprep.subr.bf16.mxu0 0
    %484 = vmatpush1.bf16.msra.mxu0 0
    %485 = vmatprep.subr.bf16.mxu0 0
    %486 = vmatpush1.bf16.msra.mxu0 0
    %487 = vmatprep.subr.bf16.mxu0 0
    %488 = vmatpush1.bf16.msra.mxu0 0
    %489 = vmatprep.subr.bf16.mxu0 0
    %490 = vmatpush1.bf16.msra.mxu0 0
    %491 = vmatprep.subr.bf16.mxu0 0
    %492 = vmatpush1.bf16.msra.mxu0 0
    %493 = vmatprep.subr.bf16.mxu0 0
    %494 = vmatpush1.bf16.msra.mxu0 0
    %495 = vmatprep.subr.bf16.mxu0 0
    %496 = vmatpush1.bf16.msra.mxu0 0
    %497 = vmatprep.subr.bf16.mxu0 0
    %498 = vmatpush1.bf16.msra.mxu0 0
    %499 = vmatprep.subr.bf16.mxu0 0
    %500 = vmatpush1.bf16.msra.mxu0 0
    %501 = vmatprep.subr.bf16.mxu0 0
    %502 = vmatpush1.bf16.msra.mxu0 0
    %503 = vmatprep.mubr.bf16.mxu0 0
    %504 = vmatmul.mubr.bf16.gmra.mrb[0].mxu0 %v469
    %v505 = vpop.f32.mrb[0].mxu0
    %v506 = vadd.f32 0.0, %v505
    %v507 = vpop.f32.mrb[0].mxu0
    %v508 = vpop.f32.mrb[0].mxu0
    %v509 = vpop.f32.mrb[0].mxu0
    %510 = vdwg.mxu0
    %v511 = vadd.f32 %v463, %v506
    %v512 = vxor.u32 %v511, 2147483648
    %v513 = vmul.f32 %v512, 1.442695
    %v514 = vpow.pop %v513
    %v515 = vadd.f32 %v514, 1.0
    %v516 = vrcp.pop %v515
    %v517 = vmul.f32 1.0, %v516
    %v518 = vtanh.pop %v511
    %v519 = vmul.f32 %v517, %v455
    %521 = vrot.lane.b32.xlu0 %v518, 64
    %v522 = vpop.permute.xlu0 %521
    %v524 = vmul.f32 %v517, %v522
    %526 = vrot.lane.b32.xlu0 %v524, 32
    %v527 = vpop.permute.xlu0 %526
    %v529 = vadd.f32 %v519, %v527
    %v530 = vtanh.pop %v529
    %532 = vrot.lane.b32.xlu0 %v530, 64
    %v533 = vpop.permute.xlu0 %532
    %v535 = vmul.f32 %v517, %v533
    %s536 = scalar_lea.vmem [#allocation2], 40
    %v537 = vld [vmem:[%s536] sm:$0xff]
    %v538 = vpack.c.bf16 %v535, %v535
    %540 = vrot.lane.b32.xlu0 %v538, 32
    %v541 = vpop.permute.xlu0 %540
    %v543 = vsel %vm171, %v541, 0
    %545 = vmatprep.subr.bf16.mxu0 0
    %546 = vmatpush1.bf16.msra.mxu0 %v167
    %547 = vmatprep.subr.bf16.mxu0 0
    %548 = vmatpush1.bf16.msra.mxu0 %v168
    %549 = vmatprep.subr.bf16.mxu0 0
    %550 = vmatpush1.bf16.msra.mxu0 0
    %551 = vmatprep.subr.bf16.mxu0 0
    %552 = vmatpush1.bf16.msra.mxu0 0
    %553 = vmatprep.subr.bf16.mxu0 0
    %554 = vmatpush1.bf16.msra.mxu0 0
    %555 = vmatprep.subr.bf16.mxu0 0
    %556 = vmatpush1.bf16.msra.mxu0 0
    %557 = vmatprep.subr.bf16.mxu0 0
    %558 = vmatpush1.bf16.msra.mxu0 0
    %559 = vmatprep.subr.bf16.mxu0 0
    %560 = vmatpush1.bf16.msra.mxu0 0
    %561 = vmatprep.subr.bf16.mxu0 0
    %562 = vmatpush1.bf16.msra.mxu0 0
    %563 = vmatprep.subr.bf16.mxu0 0
    %564 = vmatpush1.bf16.msra.mxu0 0
    %565 = vmatprep.subr.bf16.mxu0 0
    %566 = vmatpush1.bf16.msra.mxu0 0
    %567 = vmatprep.subr.bf16.mxu0 0
    %568 = vmatpush1.bf16.msra.mxu0 0
    %569 = vmatprep.subr.bf16.mxu0 0
    %570 = vmatpush1.bf16.msra.mxu0 0
    %571 = vmatprep.subr.bf16.mxu0 0
    %572 = vmatpush1.bf16.msra.mxu0 0
    %573 = vmatprep.subr.bf16.mxu0 0
    %574 = vmatpush1.bf16.msra.mxu0 0
    %575 = vmatprep.subr.bf16.mxu0 0
    %576 = vmatpush1.bf16.msra.mxu0 0
    %577 = vmatprep.mubr.bf16.mxu0 0
    %578 = vmatmul.mubr.bf16.gmra.mrb[0].mxu0 %v543
    %v579 = vpop.f32.mrb[0].mxu0
    %v580 = vadd.f32 0.0, %v579
    %v581 = vpop.f32.mrb[0].mxu0
    %v582 = vpop.f32.mrb[0].mxu0
    %v583 = vpop.f32.mrb[0].mxu0
    %584 = vdwg.mxu0
    %v585 = vadd.f32 %v537, %v580
    %v586 = vxor.u32 %v585, 2147483648
    %v587 = vmul.f32 %v586, 1.442695
    %v588 = vpow.pop %v587
    %v589 = vadd.f32 %v588, 1.0
    %v590 = vrcp.pop %v589
    %v591 = vmul.f32 1.0, %v590
    %v592 = vtanh.pop %v585
    %v593 = vmul.f32 %v591, %v529
    %595 = vrot.lane.b32.xlu0 %v592, 64
    %v596 = vpop.permute.xlu0 %595
    %v598 = vmul.f32 %v591, %v596
    %600 = vrot.lane.b32.xlu0 %v598, 32
    %v601 = vpop.permute.xlu0 %600
    %v603 = vadd.f32 %v593, %v601
    %v604 = vtanh.pop %v603
    %606 = vrot.lane.b32.xlu0 %v604, 64
    %v607 = vpop.permute.xlu0 %606
    %v609 = vmul.f32 %v591, %v607
    %s610 = scalar_lea.vmem [#allocation2], 48
    %v611 = vld [vmem:[%s610] sm:$0xff]
    %v612 = vpack.c.bf16 %v609, %v609
    %614 = vrot.lane.b32.xlu0 %v612, 32
    %v615 = vpop.permute.xlu0 %614
    %v617 = vsel %vm171, %v615, 0
    %619 = vmatprep.subr.bf16.mxu0 0
    %620 = vmatpush1.bf16.msra.mxu0 %v167
    %621 = vmatprep.subr.bf16.mxu0 0
    %622 = vmatpush1.bf16.msra.mxu0 %v168
    %623 = vmatprep.subr.bf16.mxu0 0
    %624 = vmatpush1.bf16.msra.mxu0 0
    %625 = vmatprep.subr.bf16.mxu0 0
    %626 = vmatpush1.bf16.msra.mxu0 0
    %627 = vmatprep.subr.bf16.mxu0 0
    %628 = vmatpush1.bf16.msra.mxu0 0
    %629 = vmatprep.subr.bf16.mxu0 0
    %630 = vmatpush1.bf16.msra.mxu0 0
    %631 = vmatprep.subr.bf16.mxu0 0
    %632 = vmatpush1.bf16.msra.mxu0 0
    %633 = vmatprep.subr.bf16.mxu0 0
    %634 = vmatpush1.bf16.msra.mxu0 0
    %635 = vmatprep.subr.bf16.mxu0 0
    %636 = vmatpush1.bf16.msra.mxu0 0
    %637 = vmatprep.subr.bf16.mxu0 0
    %638 = vmatpush1.bf16.msra.mxu0 0
    %639 = vmatprep.subr.bf16.mxu0 0
    %640 = vmatpush1.bf16.msra.mxu0 0
    %641 = vmatprep.subr.bf16.mxu0 0
    %642 = vmatpush1.bf16.msra.mxu0 0
    %643 = vmatprep.subr.bf16.mxu0 0
    %644 = vmatpush1.bf16.msra.mxu0 0
    %645 = vmatprep.subr.bf16.mxu0 0
    %646 = vmatpush1.bf16.msra.mxu0 0
    %647 = vmatprep.subr.bf16.mxu0 0
    %648 = vmatpush1.bf16.msra.mxu0 0
    %649 = vmatprep.subr.bf16.mxu0 0
    %650 = vmatpush1.bf16.msra.mxu0 0
    %651 = vmatprep.mubr.bf16.mxu0 0
    %652 = vmatmul.mubr.bf16.gmra.mrb[0].mxu0 %v617
    %v653 = vpop.f32.mrb[0].mxu0
    %v654 = vadd.f32 0.0, %v653
    %v655 = vpop.f32.mrb[0].mxu0
    %v656 = vpop.f32.mrb[0].mxu0
    %v657 = vpop.f32.mrb[0].mxu0
    %658 = vdwg.mxu0
    %v659 = vadd.f32 %v611, %v654
    %v660 = vxor.u32 %v659, 2147483648
    %v661 = vmul.f32 %v660, 1.442695
    %v662 = vpow.pop %v661
    %v663 = vadd.f32 %v662, 1.0
    %v664 = vrcp.pop %v663
    %v665 = vmul.f32 1.0, %v664
    %v666 = vtanh.pop %v659
    %v667 = vmul.f32 %v665, %v603
    %669 = vrot.lane.b32.xlu0 %v666, 64
    %v670 = vpop.permute.xlu0 %669
    %v672 = vmul.f32 %v665, %v670
    %674 = vrot.lane.b32.xlu0 %v672, 32
    %v675 = vpop.permute.xlu0 %674
    %v677 = vadd.f32 %v667, %v675
    %v678 = vtanh.pop %v677
    %680 = vrot.lane.b32.xlu0 %v678, 64
    %v681 = vpop.permute.xlu0 %680
    %v683 = vmul.f32 %v665, %v681
    %s684 = scalar_lea.vmem [#allocation2], 56
    %v685 = vld [vmem:[%s684] sm:$0xff]
    %v686 = vpack.c.bf16 %v683, %v683
    %688 = vrot.lane.b32.xlu0 %v686, 32
    %v689 = vpop.permute.xlu0 %688
    %v691 = vsel %vm171, %v689, 0
    %693 = vmatprep.subr.bf16.mxu0 0
    %694 = vmatpush1.bf16.msra.mxu0 %v167
    %695 = vmatprep.subr.bf16.mxu0 0
    %696 = vmatpush1.bf16.msra.mxu0 %v168
    %697 = vmatprep.subr.bf16.mxu0 0
    %698 = vmatpush1.bf16.msra.mxu0 0
    %699 = vmatprep.subr.bf16.mxu0 0
    %700 = vmatpush1.bf16.msra.mxu0 0
    %701 = vmatprep.subr.bf16.mxu0 0
    %702 = vmatpush1.bf16.msra.mxu0 0
    %703 = vmatprep.subr.bf16.mxu0 0
    %704 = vmatpush1.bf16.msra.mxu0 0
    %705 = vmatprep.subr.bf16.mxu0 0
    %706 = vmatpush1.bf16.msra.mxu0 0
    %707 = vmatprep.subr.bf16.mxu0 0
    %708 = vmatpush1.bf16.msra.mxu0 0
    %709 = vmatprep.subr.bf16.mxu0 0
    %710 = vmatpush1.bf16.msra.mxu0 0
    %711 = vmatprep.subr.bf16.mxu0 0
    %712 = vmatpush1.bf16.msra.mxu0 0
    %713 = vmatprep.subr.bf16.mxu0 0
    %714 = vmatpush1.bf16.msra.mxu0 0
    %715 = vmatprep.subr.bf16.mxu0 0
    %716 = vmatpush1.bf16.msra.mxu0 0
    %717 = vmatprep.subr.bf16.mxu0 0
    %718 = vmatpush1.bf16.msra.mxu0 0
    %719 = vmatprep.subr.bf16.mxu0 0
    %720 = vmatpush1.bf16.msra.mxu0 0
    %721 = vmatprep.subr.bf16.mxu0 0
    %722 = vmatpush1.bf16.msra.mxu0 0
    %723 = vmatprep.subr.bf16.mxu0 0
    %724 = vmatpush1.bf16.msra.mxu0 0
    %725 = vmatprep.mubr.bf16.mxu0 0
    %726 = vmatmul.mubr.bf16.gmra.mrb[0].mxu0 %v691
    %v727 = vpop.f32.mrb[0].mxu0
    %v728 = vadd.f32 0.0, %v727
    %v729 = vpop.f32.mrb[0].mxu0
    %v730 = vpop.f32.mrb[0].mxu0
    %v731 = vpop.f32.mrb[0].mxu0
    %732 = vdwg.mxu0
    %v733 = vadd.f32 %v685, %v728
    %v734 = vxor.u32 %v733, 2147483648
    %v735 = vmul.f32 %v734, 1.442695
    %v736 = vpow.pop %v735
    %v737 = vadd.f32 %v736, 1.0
    %v738 = vrcp.pop %v737
    %v739 = vmul.f32 1.0, %v738
    %v740 = vtanh.pop %v733
    %v741 = vmul.f32 %v739, %v677
    %743 = vrot.lane.b32.xlu0 %v740, 64
    %v744 = vpop.permute.xlu0 %743
    %v746 = vmul.f32 %v739, %v744
    %748 = vrot.lane.b32.xlu0 %v746, 32
    %v749 = vpop.permute.xlu0 %748
    %v751 = vadd.f32 %v741, %v749
    %v752 = vtanh.pop %v751
    %754 = vrot.lane.b32.xlu0 %v752, 64
    %v755 = vpop.permute.xlu0 %754
    %v757 = vmul.f32 %v739, %v755
    %v758 = vpack.c.bf16 %v757, %v757
    %v759 = vld [vmem:[%s4] sm:$0xf]
    %v760 = vld [vmem:[%s4 + $0x4] sm:$0xf]
    %v761 = vld [vmem:[%s4 + $0x8] sm:$0xf]
    %v762 = vld [vmem:[%s4 + $0xc] sm:$0xf]
    %v763 = vld [vmem:[%s5] sm:$0x1]
    %v765 = vlaneseq
    %v766 = vshrl.u32 %v765, 7
    %v767 = vsub.s32 0, %v766
    %v768 = vrot.slane %v763, %v767
    %771 = vrot.lane.b32.xlu0 %v758, 32
    %v772 = vpop.permute.xlu0 %771
    %v777 = vunpack.c.l.b16 %v759
    %v778 = vunpack.c.l.b16 %v760
    %v779 = vunpack.c.l.b16 %v761
    %v780 = vunpack.c.l.b16 %v762
    %v781 = vpack.c.b16 %v778, %v777
    %v782 = vpack.c.b16 %v780, %v779
    %v786 = vsel %vm171, %v772, 0
    %788 = vmatprep.subr.bf16.mxu0 0
    %789 = vmatpush1.bf16.msra.mxu0 %v781
    %790 = vmatprep.subr.bf16.mxu0 0
    %791 = vmatpush1.bf16.msra.mxu0 %v782
    %792 = vmatprep.subr.bf16.mxu0 0
    %793 = vmatpush1.bf16.msra.mxu0 0
    %794 = vmatprep.subr.bf16.mxu0 0
    %795 = vmatpush1.bf16.msra.mxu0 0
    %796 = vmatprep.subr.bf16.mxu0 0
    %797 = vmatpush1.bf16.msra.mxu0 0
    %798 = vmatprep.subr.bf16.mxu0 0
    %799 = vmatpush1.bf16.msra.mxu0 0
    %800 = vmatprep.subr.bf16.mxu0 0
    %801 = vmatpush1.bf16.msra.mxu0 0
    %802 = vmatprep.subr.bf16.mxu0 0
    %803 = vmatpush1.bf16.msra.mxu0 0
    %804 = vmatprep.subr.bf16.mxu0 0
    %805 = vmatpush1.bf16.msra.mxu0 0
    %806 = vmatprep.subr.bf16.mxu0 0
    %807 = vmatpush1.bf16.msra.mxu0 0
    %808 = vmatprep.subr.bf16.mxu0 0
    %809 = vmatpush1.bf16.msra.mxu0 0
    %810 = vmatprep.subr.bf16.mxu0 0
    %811 = vmatpush1.bf16.msra.mxu0 0
    %812 = vmatprep.subr.bf16.mxu0 0
    %813 = vmatpush1.bf16.msra.mxu0 0
    %814 = vmatprep.subr.bf16.mxu0 0
    %815 = vmatpush1.bf16.msra.mxu0 0
    %816 = vmatprep.subr.bf16.mxu0 0
    %817 = vmatpush1.bf16.msra.mxu0 0
    %818 = vmatprep.subr.bf16.mxu0 0
    %819 = vmatpush1.bf16.msra.mxu0 0
    %820 = vmatprep.mubr.bf16.mxu0 0
    %821 = vmatmul.mubr.bf16.gmra.mrb[0].mxu0 %v786
    %v822 = vpop.f32.mrb[0].mxu0
    %v823 = vadd.f32 %v768, %v822
    %v824 = vpop.f32.mrb[0].mxu0
    %v825 = vpop.f32.mrb[0].mxu0
    %v826 = vpop.f32.mrb[0].mxu0
    %827 = vdwg.mxu0
    %828 = vst [vmem:[#allocation3] sm:$0xff] %v823
    // Predicated region
    $region26: #{tpu_custom_call.1} parent=1 // pred_check
      _
    $region27: #{tpu_custom_call.1} parent=1 // pred_check_branch
      %830 = sbr.rel (0) target = $region29
    $region28: #{tpu_custom_call.1} parent=1 // pred_region
      %s832 = ssub.s32 128, 128
      %833 = vsyncadd [#allocation4], %s832
      %s835 = sshll.u32 [#allocation3], 4
      %s836 = int_to_ptr.vmem [resolvable:$true] %s835
      %838 = dma.vmem_to_hbm [thread:$0]  %s836, 128, %s6, [#allocation4]
    $region29: #{tpu_custom_call.1} parent=1 // pred_fallthru
      _
    // Predicated region
    $region30: #{tpu_custom_call.1} parent=1 // pred_check
      _
    $region31: #{tpu_custom_call.1} parent=1 // pred_check_branch
      %840 = sbr.rel (0) target = $region33
    $region32: #{tpu_custom_call.1} parent=1 // pred_region
      %841 = dma.done [#allocation4], 128
    $region33: #{tpu_custom_call.1} parent=1 // pred_fallthru
      _
    %842 = vsyncpa [#allocation4], 1

</llo_original>
